<compile_context>
chip_gen: v7x
topology: tpu7x:2x2x1
jax: 0.10.0
libtpu: 0.0.40
codegen_flags: <defaults>
</compile_context>

<pallas_src>
import math

import jax
import jax.numpy as jnp
from jax.experimental import pallas as pl
from jax.experimental.pallas import tpu as pltpu

BN_EPS = 1e-5
MATMUL_DTYPE = jnp.bfloat16      # MXU input dtype (f32 accumulation everywhere)


def _round_up(a, b):
    return ((a + b - 1) // b) * b


# --------------------------------------------------------------------------- #
# Phase 1: conv-as-matmul + per-tile BN partial statistics
# --------------------------------------------------------------------------- #
def conv_stats_kernel(p_ref, w_ref, conv_ref, psum_ref, psq_ref):
    # p: (TILE_M, K_pad) bf16   w: (K_pad, C_pad) bf16
    # conv: (TILE_M, C_pad) f32   psum/psq: (8, C_pad) f32 (row-replicated tile stats)
    conv = jnp.dot(p_ref[...], w_ref[...], preferred_element_type=jnp.float32)
    conv_ref[...] = conv
    s = jnp.sum(conv, axis=0, keepdims=True)           # (1, C_pad)
    sq = jnp.sum(conv * conv, axis=0, keepdims=True)   # (1, C_pad)
    psum_ref[...] = jnp.broadcast_to(s, psum_ref.shape)
    psq_ref[...] = jnp.broadcast_to(sq, psq_ref.shape)


# --------------------------------------------------------------------------- #
# Phase 2: fused BN scale/shift + ReLU  (MaxPool2d(1,1) is the identity)
# --------------------------------------------------------------------------- #
def bn_relu_kernel(conv_ref, scale_ref, shift_ref, out_ref):
    y = conv_ref[...] * scale_ref[...] + shift_ref[...]
    out_ref[...] = jnp.maximum(y, 0.0).astype(out_ref.dtype)


def asap_conv_block_forward(x_nchw, weight, bias, gamma, beta, *, stride, padding,
                            tile_m=256):
    """x_nchw: (N, Cin, H, W); weight: (Cout, Cin, KH, KW) (PyTorch layouts)."""
    del bias  # Cancels exactly under training-mode BatchNorm (mean subtraction).

    N, Cin, H, W = x_nchw.shape
    Cout, _, KH, KW = weight.shape
    Ho = (H + 2 * padding - KH) // stride + 1
    Wo = (W + 2 * padding - KW) // stride + 1

    M = N * Ho * Wo
    K = KH * KW * Cin
    C_pad = _round_up(Cout, 128)          # lane-dense output / matmul N
    K_pad = _round_up(K, 16)              # sublane-friendly contraction dim (bf16)
    M_pad = _round_up(M, tile_m)
    G = M_pad // tile_m                   # number of M tiles

    # ---- glue: NHWC + spatial pad + im2col (zero-padded rows/cols are exact 0s,
    #      so they contribute nothing to the conv or the BN statistics) ----
    x = jnp.transpose(x_nchw, (0, 2, 3, 1))                       # NHWC
    x = jnp.pad(x, ((0, 0), (padding, padding), (padding, padding), (0, 0)))
    cols = []
    for kh in range(KH):
        for kw in range(KW):
            cols.append(x[:, kh:kh + Ho * stride:stride,
                          kw:kw + Wo * stride:stride, :])
    patches = jnp.concatenate(cols, axis=-1).reshape(M, K)        # (M, K)
    patches = jnp.pad(patches, ((0, M_pad - M), (0, K_pad - K)))
    patches = patches.astype(MATMUL_DTYPE)

    # weight (Cout,Cin,KH,KW) -> (KH,KW,Cin,Cout) -> (K, Cout), matches patch order
    w2d = jnp.transpose(weight, (2, 3, 1, 0)).reshape(K, Cout)
    w2d = jnp.pad(w2d, ((0, K_pad - K), (0, C_pad - Cout))).astype(MATMUL_DTYPE)

    cparams = pltpu.CompilerParams(
        dimension_semantics=("parallel",),        # independent M tiles -> megacore
        vmem_limit_bytes=32 * 1024 * 1024,        # safe on v5e/v6e/v7x
    )

    # ---------------- phase 1: conv + partial stats ---------------- #
    conv_out, psum, psq = pl.pallas_call(
        conv_stats_kernel,
        out_shape=(
            jax.ShapeDtypeStruct((M_pad, C_pad), jnp.float32),
            jax.ShapeDtypeStruct((8 * G, C_pad), jnp.float32),
            jax.ShapeDtypeStruct((8 * G, C_pad), jnp.float32),
        ),
        grid_spec=pltpu.PrefetchScalarGridSpec(
            num_scalar_prefetch=0,
            grid=(G,),
            in_specs=[
                pl.BlockSpec((tile_m, K_pad), lambda i: (i, 0)),
                pl.BlockSpec((K_pad, C_pad), lambda i: (0, 0)),
            ],
            out_specs=[
                pl.BlockSpec((tile_m, C_pad), lambda i: (i, 0)),
                pl.BlockSpec((8, C_pad), lambda i: (i, 0)),
                pl.BlockSpec((8, C_pad), lambda i: (i, 0)),
            ],
        ),
        compiler_params=cparams,
    )(patches, w2d)

    # ---- glue: fold BN into per-channel scale/shift (tiny (C_pad,) math) ----
    tot = jnp.sum(psum[::8, :], axis=0)               # (C_pad,) rows are replicated
    tot_sq = jnp.sum(psq[::8, :], axis=0)
    mean = tot / M                                    # divide by the true row count
    var = jnp.maximum(tot_sq / M - mean * mean, 0.0)  # biased var (PyTorch BN norm)
    g = jnp.pad(gamma.astype(jnp.float32), (0, C_pad - Cout))
    b = jnp.pad(beta.astype(jnp.float32), (0, C_pad - Cout))
    scale = (g * jax.lax.rsqrt(var + BN_EPS)).reshape(1, C_pad)
    shift = (b - mean * scale[0]).reshape(1, C_pad)

    # ---------------- phase 2: apply scale/shift + ReLU ---------------- #
    out_flat = pl.pallas_call(
        bn_relu_kernel,
        out_shape=jax.ShapeDtypeStruct((M_pad, C_pad), jnp.float32),
        grid_spec=pltpu.PrefetchScalarGridSpec(
            num_scalar_prefetch=0,
            grid=(G,),
            in_specs=[
                pl.BlockSpec((tile_m, C_pad), lambda i: (i, 0)),
                pl.BlockSpec((1, C_pad), lambda i: (0, 0)),
                pl.BlockSpec((1, C_pad), lambda i: (0, 0)),
            ],
            out_specs=pl.BlockSpec((tile_m, C_pad), lambda i: (i, 0)),
        ),
        compiler_params=cparams,
    )(conv_out, scale, shift)

    out = out_flat[:M, :Cout].reshape(N, Ho, Wo, Cout)
    # TODO(synk): running_mean/running_var updates (stateful, forward-invariant) and
    # skipping this transpose when the consumer accepts NHWC.
    return jnp.transpose(out, (0, 3, 1, 2))                       # back to NCHW


def init_params(key, in_channels, out_channels, kernel_size):
    """Deterministic init mirroring nn.Conv2d / kaiming_uniform_(a=sqrt(5))."""
    kw, kb, _ = jax.random.split(key, 3)
    fan_in = in_channels * kernel_size * kernel_size
    bound = 1.0 / math.sqrt(fan_in)
    weight = jax.random.uniform(
        kw, (out_channels, in_channels, kernel_size, kernel_size),
        minval=-bound, maxval=bound, dtype=jnp.float32)
    bias = jax.random.uniform(kb, (out_channels,),
                              minval=-bound, maxval=bound, dtype=jnp.float32)
    gamma = jnp.ones((out_channels,), jnp.float32)    # BatchNorm2d weight
    beta = jnp.zeros((out_channels,), jnp.float32)    # BatchNorm2d bias
    return weight, bias, gamma, beta


def reference_forward(x, weight, bias, gamma, beta, *, stride, padding):
    """Pure-JAX f32 reference (includes the conv bias, exactly like PyTorch)."""
    conv = jax.lax.conv_general_dilated(
        x, weight, window_strides=(stride, stride),
        padding=[(padding, padding), (padding, padding)],
        dimension_numbers=("NCHW", "OIHW", "NCHW"))
    conv = conv + bias[None, :, None, None]
    mean = jnp.mean(conv, axis=(0, 2, 3), keepdims=True)
    var = jnp.mean((conv - mean) ** 2, axis=(0, 2, 3), keepdims=True)
    xhat = (conv - mean) * jax.lax.rsqrt(var + BN_EPS)
    y = xhat * gamma[None, :, None, None] + beta[None, :, None, None]
    return jnp.maximum(y, 0.0)


if __name__ == "__main__":
    # Small shapes consistent with the module: batch=2, Cin=4, 16x16 spatial,
    # Cout=8, 3x3 conv, stride=1, padding=1.
    key = jax.random.PRNGKey(0)
    kx, kp = jax.random.split(key)
    N, Cin, H, W = 2, 4, 16, 16
    Cout, Ksz, stride, padding = 8, 3, 1, 1

    x = jax.random.normal(kx, (N, Cin, H, W), dtype=jnp.float32)
    weight, bias, gamma, beta = init_params(kp, Cin, Cout, Ksz)

    # `save` (the `shared` tensor) only affects the custom backward; forward ignores it.
    y = asap_conv_block_forward(x, weight, bias, gamma, beta,
                                stride=stride, padding=padding)
    y = jax.block_until_ready(y)

    assert y.shape == (N, Cout, H, W)
    assert bool(jnp.all(y >= 0.0))                      # ReLU output

    y_ref = reference_forward(x, weight, bias, gamma, beta,
                              stride=stride, padding=padding)
    max_err = float(jnp.max(jnp.abs(y - y_ref)))
    assert max_err < 5e-2, f"max abs err vs reference: {max_err}"

    print("KERNEL_OK")
</pallas_src>

<mosaic_0001>
module attributes {stable_mosaic.version = 11 : i64} {
  func.func @conv_stats_kernel(%arg0: i32, %arg1: memref<256x48xbf16, #tpu.memory_space<vmem>>, %arg2: memref<48x128xbf16, #tpu.memory_space<vmem>>, %arg3: memref<256x128xf32, #tpu.memory_space<vmem>>, %arg4: memref<8x128xf32, #tpu.memory_space<vmem>>, %arg5: memref<8x128xf32, #tpu.memory_space<vmem>>) attributes {dimension_semantics = [#tpu.dimension_semantics<parallel>], iteration_bounds = array<i64: 2>, scalar_prefetch = 0 : i64, scratch_operands = 0 : i64, tpu.core_type = #tpu.core_type<tc>, window_params = [{transform_indices = @transform_0, window_bounds = array<i64: 256, 48>}, {pipeline_mode = #tpu.pipeline_mode<synchronous>, transform_indices = @transform_1, window_bounds = array<i64: 48, 128>}, {transform_indices = @transform_2, window_bounds = array<i64: 256, 128>}, {transform_indices = @transform_3, window_bounds = array<i64: 8, 128>}, {transform_indices = @transform_4, window_bounds = array<i64: 8, 128>}]} {
    %c0 = arith.constant 0 : index
    %c0_0 = arith.constant 0 : index
    %0 = vector.load %arg1[%c0, %c0_0] : memref<256x48xbf16, #tpu.memory_space<vmem>>, vector<256x48xbf16>
    %c0_1 = arith.constant 0 : index
    %c0_2 = arith.constant 0 : index
    %1 = vector.load %arg2[%c0_1, %c0_2] : memref<48x128xbf16, #tpu.memory_space<vmem>>, vector<48x128xbf16>
    %cst = arith.constant dense<0.000000e+00> : vector<256x128xf32>
    %2 = tpu.matmul %0, %1, %cst {dimension_numbers = #tpu.dot_dimension_numbers<[1], [0], [0], [1], [0, 0, 1, 1], [], []>} : vector<256x48xbf16>, vector<48x128xbf16>, vector<256x128xf32> -> vector<256x128xf32>
    %c0_3 = arith.constant 0 : index
    %c0_4 = arith.constant 0 : index
    %3 = vector.load %arg3[%c0_3, %c0_4] : memref<256x128xf32, #tpu.memory_space<vmem>>, vector<256x128xf32>
    tpu.vector_store %arg3[%c0_3, %c0_4], %2 {strides = array<i32>} : memref<256x128xf32, #tpu.memory_space<vmem>>, vector<256x128xf32>,
    %cst_5 = arith.constant dense<0.000000e+00> : vector<128xf32>
    %4 = vector.multi_reduction <add>, %2, %cst_5 [0] : vector<256x128xf32> to vector<128xf32>
    %5 = vector.shape_cast %4 : vector<128xf32> to vector<1x128xf32>
    %6 = arith.mulf %2, %2 : vector<256x128xf32>
    %cst_6 = arith.constant dense<0.000000e+00> : vector<128xf32>
    %7 = vector.multi_reduction <add>, %6, %cst_6 [0] : vector<256x128xf32> to vector<128xf32>
    %8 = vector.shape_cast %7 : vector<128xf32> to vector<1x128xf32>
    %9 = vector.shape_cast %5 : vector<1x128xf32> to vector<1x128xf32>
    %10 = vector.broadcast %9 : vector<1x128xf32> to vector<8x128xf32>
    %c0_7 = arith.constant 0 : index
    %c0_8 = arith.constant 0 : index
    %11 = vector.load %arg4[%c0_7, %c0_8] : memref<8x128xf32, #tpu.memory_space<vmem>>, vector<8x128xf32>
    tpu.vector_store %arg4[%c0_7, %c0_8], %10 {strides = array<i32>} : memref<8x128xf32, #tpu.memory_space<vmem>>, vector<8x128xf32>,
    %12 = vector.shape_cast %8 : vector<1x128xf32> to vector<1x128xf32>
    %13 = vector.broadcast %12 : vector<1x128xf32> to vector<8x128xf32>
    %c0_9 = arith.constant 0 : index
    %c0_10 = arith.constant 0 : index
    %14 = vector.load %arg5[%c0_9, %c0_10] : memref<8x128xf32, #tpu.memory_space<vmem>>, vector<8x128xf32>
    tpu.vector_store %arg5[%c0_9, %c0_10], %13 {strides = array<i32>} : memref<8x128xf32, #tpu.memory_space<vmem>>, vector<8x128xf32>,
    return
  }
  func.func @transform_0(%arg0: i32) -> (i32, i32) {
    %c0_i32 = arith.constant 0 : i32
    %c0_i32_0 = arith.constant 0 : i32
    return %arg0, %c0_i32 : i32, i32
  }
  func.func @transform_1(%arg0: i32) -> (i32, i32) {
    %c0_i32 = arith.constant 0 : i32
    %c0_i32_0 = arith.constant 0 : i32
    %c0_i32_1 = arith.constant 0 : i32
    return %c0_i32, %c0_i32_0 : i32, i32
  }
  func.func @transform_2(%arg0: i32) -> (i32, i32) {
    %c0_i32 = arith.constant 0 : i32
    %c0_i32_0 = arith.constant 0 : i32
    return %arg0, %c0_i32 : i32, i32
  }
  func.func @transform_3(%arg0: i32) -> (i32, i32) {
    %c0_i32 = arith.constant 0 : i32
    %c0_i32_0 = arith.constant 0 : i32
    return %arg0, %c0_i32 : i32, i32
  }
  func.func @transform_4(%arg0: i32) -> (i32, i32) {
    %c0_i32 = arith.constant 0 : i32
    %c0_i32_0 = arith.constant 0 : i32
    return %arg0, %c0_i32 : i32, i32
  }
}

</mosaic_0001>

<llo_original>
// kernel: tpu_custom_call.1
$region0: #{tpu_custom_call.1}
  #allocation0 [shape = 'u32[]', space=smem, size = 0x4, offset = 0x4, fixed_abs, tag = 'smem constant byte address 0x4 - core index']
  #allocation1 [shape = 'u32[144,128]{1,0:T(1,128)}', space=vmem, size = 0x12000, scoped, tag = 'internal scratch']
  %s0 = inlined_call_operand.vmem [shape: bf16[512,48], index: 0, kind: input, shape index: {}]
  %s1 = inlined_call_operand.vmem [shape: bf16[48,128], index: 1, kind: input, shape index: {}]
  %s2 = inlined_call_operand.hbm [shape: f32[512,128], index: 2, kind: output, shape index: {0}]
  %s3 = inlined_call_operand.hbm [shape: f32[16,128], index: 3, kind: output, shape index: {1}]
  %s4 = inlined_call_operand.hbm [shape: f32[16,128], index: 4, kind: output, shape index: {2}]
  %5 = xla_tuple %s2, %s3, %s4
  %s6 = sld [smem:[#allocation0]]
  $region57: #{tpu_custom_call.1} parent=0
    _
  %s8 = ssub.s32 1, %s6
  %s9 = scalar_select 0, %s8, %s6
  $region1: #{tpu_custom_call.1} parent=0
    #allocation2 [shape = 'u8[262144]{0}', space=vmem, size = 0x40000, scoped, tag = 'output window, operand 0']
    #allocation3 [shape = 's32[2]{0}', space=sflag, size = 0x8, scoped, tag = 'scoped memory for tpu_custom_call.1']
    #allocation4 [shape = 'u8[8192]{0}', space=vmem, size = 0x2000, scoped, tag = 'output window, operand 1']
    #allocation5 [shape = 's32[2]{0}', space=sflag, size = 0x8, scoped, tag = 'scoped memory for tpu_custom_call.1']
    #allocation6 [shape = 'u8[8192]{0}', space=vmem, size = 0x2000, scoped, tag = 'output window, operand 2']
    %10 = vsyncpa [#allocation3], 0
    %s11 = scalar_lea.sflag [#allocation3], 1
    %12 = vsyncpa %s11, 0
    %13 = vsyncpa [#allocation5], 0
    %s14 = scalar_lea.sflag [#allocation5], 1
    %15 = vsyncpa %s14, 0
    loop: start=0, step=1, limit=4
    $region2: #{tpu_custom_call.1} parent=1 // loop_pre_header
      _
    $region3: #{tpu_custom_call.1} parent=1 // loop_header
      %s17 = sphi 0, %s21
      %p18 = scmp.ge.s32.totalorder %s17, 4
      %s27 = sphi 0, %s29
      %s30 = sphi 0, %s27
      %s31 = sphi 0, %s30
      %s47 = sphi 0, %s31
      %s51 = sphi 0, %s51
      %s53 = sphi 0, %s51
      %s54 = sphi 0, %s53
      %s68 = sphi 0, %s54
      %s74 = sphi 0, %s76
      %s77 = sphi 0, %s74
      %s78 = sphi 0, %s77
      %s94 = sphi 0, %s78
      %s100 = sphi 0, %s102
      %s103 = sphi 0, %s100
      %s104 = sphi 0, %s103
      %s120 = sphi 0, %s104
      %s126 = sphi 0, %s128
      %s129 = sphi 0, %s126
      %s130 = sphi 0, %s129
      %s146 = sphi 0, %s130
    $region4: #{tpu_custom_call.1} parent=1 // loop_header_branch
      %20 = sbr.rel (%p18) target = $region8
    $region5: #{tpu_custom_call.1} parent=1 // loop_body
      %s22 = ssub.s32 %s17, 1
      %s23 = ssub.s32 %s17, 2
      %s24 = sadd.s32 %s17, 1
      %s25 = ssub.s32 %s17, %s24
      %p26 = scmp.eq.s32.totalorder %s25, 0
      %s28 = sadd.s32 %s27, 1
      %s29 = scalar_select %p26, %s27, %s28
      %p32 = pneg %p26
      %p33 = scmp.eq.s32.totalorder %s17, 1
      %p34 = por %p32, %p33
      %p35 = scmp.ne.s32.totalorder %s27, %s30
      %p36 = scmp.eq.s32.totalorder %s17, 0
      %p37 = por %p35, %p36
      %p38 = scmp.ne.s32.totalorder %s27, %s30
      %p39 = scmp.eq.s32.totalorder %s22, 1
      %p40 = por %p38, %p39
      %p41 = scmp.ne.s32.totalorder %s30, %s31
      %p42 = scmp.eq.s32.totalorder %s22, 0
      %p43 = por %p41, %p42
      %p44 = scmp.ne.s32.totalorder %s30, %s31
      %p45 = scmp.eq.s32.totalorder %s23, 1
      %p46 = por %p44, %p45
      %p48 = scmp.ne.s32.totalorder %s31, %s47
      %p49 = scmp.eq.s32.totalorder %s23, 0
      %p50 = por %p48, %p49
      %s52 = sadd.s32 %s51, 1
      %p55 = scmp.eq.s32.totalorder %s17, 1
      %p56 = scmp.ne.s32.totalorder %s51, %s53
      %p57 = scmp.eq.s32.totalorder %s17, 0
      %p58 = por %p56, %p57
      %p59 = scmp.ne.s32.totalorder %s51, %s53
      %p60 = scmp.eq.s32.totalorder %s22, 1
      %p61 = por %p59, %p60
      %p62 = scmp.ne.s32.totalorder %s53, %s54
      %p63 = scmp.eq.s32.totalorder %s22, 0
      %p64 = por %p62, %p63
      %p65 = scmp.ne.s32.totalorder %s53, %s54
      %p66 = scmp.eq.s32.totalorder %s23, 1
      %p67 = por %p65, %p66
      %p69 = scmp.ne.s32.totalorder %s54, %s68
      %p70 = scmp.eq.s32.totalorder %s23, 0
      %p71 = por %p69, %p70
      %s72 = ssub.s32 %s17, %s24
      %p73 = scmp.eq.s32.totalorder %s72, 0
      %s75 = sadd.s32 %s74, 1
      %s76 = scalar_select %p73, %s74, %s75
      %p79 = pneg %p73
      %p80 = scmp.eq.s32.totalorder %s17, 1
      %p81 = por %p79, %p80
      %p82 = scmp.ne.s32.totalorder %s74, %s77
      %p83 = scmp.eq.s32.totalorder %s17, 0
      %p84 = por %p82, %p83
      %p85 = scmp.ne.s32.totalorder %s74, %s77
      %p86 = scmp.eq.s32.totalorder %s22, 1
      %p87 = por %p85, %p86
      %p88 = scmp.ne.s32.totalorder %s77, %s78
      %p89 = scmp.eq.s32.totalorder %s22, 0
      %p90 = por %p88, %p89
      %p91 = scmp.ne.s32.totalorder %s77, %s78
      %p92 = scmp.eq.s32.totalorder %s23, 1
      %p93 = por %p91, %p92
      %p95 = scmp.ne.s32.totalorder %s78, %s94
      %p96 = scmp.eq.s32.totalorder %s23, 0
      %p97 = por %p95, %p96
      %s98 = ssub.s32 %s17, %s24
      %p99 = scmp.eq.s32.totalorder %s98, 0
      %s101 = sadd.s32 %s100, 1
      %s102 = scalar_select %p99, %s100, %s101
      %p105 = pneg %p99
      %p106 = scmp.eq.s32.totalorder %s17, 1
      %p107 = por %p105, %p106
      %p108 = scmp.ne.s32.totalorder %s100, %s103
      %p109 = scmp.eq.s32.totalorder %s17, 0
      %p110 = por %p108, %p109
      %p111 = scmp.ne.s32.totalorder %s100, %s103
      %p112 = scmp.eq.s32.totalorder %s22, 1
      %p113 = por %p111, %p112
      %p114 = scmp.ne.s32.totalorder %s103, %s104
      %p115 = scmp.eq.s32.totalorder %s22, 0
      %p116 = por %p114, %p115
      %p117 = scmp.ne.s32.totalorder %s103, %s104
      %p118 = scmp.eq.s32.totalorder %s23, 1
      %p119 = por %p117, %p118
      %p121 = scmp.ne.s32.totalorder %s104, %s120
      %p122 = scmp.eq.s32.totalorder %s23, 0
      %p123 = por %p121, %p122
      %s124 = ssub.s32 %s17, %s24
      %p125 = scmp.eq.s32.totalorder %s124, 0
      %s127 = sadd.s32 %s126, 1
      %s128 = scalar_select %p125, %s126, %s127
      %p131 = pneg %p125
      %p132 = scmp.eq.s32.totalorder %s17, 1
      %p133 = por %p131, %p132
      %p134 = scmp.ne.s32.totalorder %s126, %s129
      %p135 = scmp.eq.s32.totalorder %s17, 0
      %p136 = por %p134, %p135
      %p137 = scmp.ne.s32.totalorder %s126, %s129
      %p138 = scmp.eq.s32.totalorder %s22, 1
      %p139 = por %p137, %p138
      %p140 = scmp.ne.s32.totalorder %s129, %s130
      %p141 = scmp.eq.s32.totalorder %s22, 0
      %p142 = por %p140, %p141
      %p143 = scmp.ne.s32.totalorder %s129, %s130
      %p144 = scmp.eq.s32.totalorder %s23, 1
      %p145 = por %p143, %p144
      %p147 = scmp.ne.s32.totalorder %s130, %s146
      %p148 = scmp.eq.s32.totalorder %s23, 0
      %p149 = por %p147, %p148
      %p150 = scmp.le.s32.totalorder 1, %s17
      %p151 = scmp.lt.s32.totalorder %s17, 3
      %p152 = pnand %p150, %p151
      %p153 = pneg %p152
      // Predicated region
      $region9: #{tpu_custom_call.1} parent=5 // pred_check
        _
      $region10: #{tpu_custom_call.1} parent=5 // pred_check_branch
        %155 = sbr.rel (%p152) target = $region12
      $region11: #{tpu_custom_call.1} parent=5 // pred_region
        %s156 = ssub.s32 %s17, 1
        // Predicated region
        $region13: #{tpu_custom_call.1} parent=11 // pred_check
          %p157 = pneg %p64
        $region14: #{tpu_custom_call.1} parent=11 // pred_check_branch
          %159 = sbr.rel (%p157) target = $region16
        $region15: #{tpu_custom_call.1} parent=11 // pred_region
          _
        $region16: #{tpu_custom_call.1} parent=11 // pred_fallthru
          _
      $region12: #{tpu_custom_call.1} parent=5 // pred_fallthru
        _
      %p160 = scmp.lt.s32.totalorder %s17, 2
      // Predicated region
      $region17: #{tpu_custom_call.1} parent=5 // pred_check
        %p161 = pneg %p160
      $region18: #{tpu_custom_call.1} parent=5 // pred_check_branch
        %163 = sbr.rel (%p161) target = $region20
      $region19: #{tpu_custom_call.1} parent=5 // pred_region
        // Predicated region
        $region21: #{tpu_custom_call.1} parent=19 // pred_check
          %p164 = pneg %p37
        $region22: #{tpu_custom_call.1} parent=19 // pred_check_branch
          %166 = sbr.rel (%p164) target = $region24
        $region23: #{tpu_custom_call.1} parent=19 // pred_region
          %s167 = smul.u32 32, %s17
          %p168 = scmp.lt.s32.totalorder %s167, 63
          %s169 = scalar_select %p168, %s167, 63
          %s170 = smul.addr %s169, 4
          %s171 = scalar_lea.vmem %s0, %s170
          %s172 = smul.u32 32, %s17
        $region24: #{tpu_custom_call.1} parent=19 // pred_fallthru
          _
      $region20: #{tpu_custom_call.1} parent=5 // pred_fallthru
        _
      %p173 = scmp.le.s32.totalorder 1, %s17
      %p174 = scmp.lt.s32.totalorder %s17, 3
      %p175 = pnand %p173, %p174
      %p176 = pneg %p175
      // Predicated region
      $region25: #{tpu_custom_call.1} parent=5 // pred_check
        _
      $region26: #{tpu_custom_call.1} parent=5 // pred_check_branch
        %178 = sbr.rel (%p175) target = $region28
      $region27: #{tpu_custom_call.1} parent=5 // pred_region
        %s179 = ssub.s32 %s17, 1
        %s180 = smul.u32 32, %s22
        %p181 = scmp.lt.s32.totalorder %s180, 63
        %s182 = scalar_select %p181, %s180, 63
        %s183 = smul.addr %s182, 4
        %s184 = scalar_lea.vmem %s0, %s183
        %p185 = pneg %p43
        %p186 = pneg %p40
        %p187 = pneg %p64
        %p188 = pneg %p61
        %p189 = pneg %p90
        %p190 = pneg %p87
        %s191 = sand.u32 %s77, 1
        %s192 = scalar_lea.sflag [#allocation3], %s191
        %s193 = sand.u32 %s77, 1
        %s194 = smul.addr %s193, 256
        %s195 = scalar_lea.vmem [#allocation2], %s194
        %p196 = pneg %p116
        %p197 = pneg %p113
        %s198 = sand.u32 %s22, 1
        %s199 = scalar_lea.sflag [#allocation5], %s198
        %s200 = sand.u32 %s103, 1
        %s201 = smul.addr %s200, 8
        %s202 = scalar_lea.vmem [#allocation4], %s201
        %p203 = pneg %p142
        %p204 = pneg %p139
        %s205 = sand.u32 %s22, 1
        %s206 = scalar_lea.sflag [#allocation5], %s205
        %s207 = sand.u32 %s129, 1
        %s208 = smul.addr %s207, 8
        %s209 = scalar_lea.vmem [#allocation6], %s208
        %s210 = smul.u32 32, %s22
        %p211 = scmp.lt.s32.totalorder %s210, 63
        %s212 = scalar_select %p211, %s210, 63
        %s213 = smul.addr %s212, 4
        %s214 = scalar_lea.vmem %s0, %s213
        %s215 = smul.u32 32, %s22
        %s216 = smul.u32 32, %s22
        %v218 = vld [vmem:[%s214] sm:$0xf]
        %v219 = vld [vmem:[%s214 + $0x4] sm:$0xf]
        %v220 = vld [vmem:[%s214 + $0x8] sm:$0xf]
        %v221 = vld [vmem:[%s214 + $0xc] sm:$0xf]
        %v222 = vld [vmem:[%s214 + $0x10] sm:$0xf]
        %v223 = vld [vmem:[%s214 + $0x14] sm:$0xf]
        %v224 = vld [vmem:[%s214 + $0x18] sm:$0xf]
        %v225 = vld [vmem:[%s214 + $0x1c] sm:$0xf]
        %v226 = vld [vmem:[%s214 + $0x20] sm:$0xf]
        %v227 = vld [vmem:[%s214 + $0x24] sm:$0xf]
        %v228 = vld [vmem:[%s214 + $0x28] sm:$0xf]
        %v229 = vld [vmem:[%s214 + $0x2c] sm:$0xf]
        %v230 = vld [vmem:[%s214 + $0x30] sm:$0xf]
        %v231 = vld [vmem:[%s214 + $0x34] sm:$0xf]
        %v232 = vld [vmem:[%s214 + $0x38] sm:$0xf]
        %v233 = vld [vmem:[%s214 + $0x3c] sm:$0xf]
        %v234 = vld [vmem:[%s214 + $0x40] sm:$0xf]
        %v235 = vld [vmem:[%s214 + $0x44] sm:$0xf]
        %v236 = vld [vmem:[%s214 + $0x48] sm:$0xf]
        %v237 = vld [vmem:[%s214 + $0x4c] sm:$0xf]
        %v238 = vld [vmem:[%s214 + $0x50] sm:$0xf]
        %v239 = vld [vmem:[%s214 + $0x54] sm:$0xf]
        %v240 = vld [vmem:[%s214 + $0x58] sm:$0xf]
        %v241 = vld [vmem:[%s214 + $0x5c] sm:$0xf]
        %v242 = vld [vmem:[%s214 + $0x60] sm:$0xf]
        %v243 = vld [vmem:[%s214 + $0x64] sm:$0xf]
        %v244 = vld [vmem:[%s214 + $0x68] sm:$0xf]
        %v245 = vld [vmem:[%s214 + $0x6c] sm:$0xf]
        %v246 = vld [vmem:[%s214 + $0x70] sm:$0xf]
        %v247 = vld [vmem:[%s214 + $0x74] sm:$0xf]
        %v248 = vld [vmem:[%s214 + $0x78] sm:$0xf]
        %v249 = vld [vmem:[%s214 + $0x7c] sm:$0xf]
        %v250 = vld [vmem:[%s1] sm:$0xf]
        %v251 = vld [vmem:[%s1 + $0x4] sm:$0xf]
        %v252 = vld [vmem:[%s1 + $0x8] sm:$0xf]
        %v253 = vld [vmem:[%s1 + $0xc] sm:$0xf]
        %v254 = vld [vmem:[%s1 + $0x10] sm:$0xf]
        %v255 = vld [vmem:[%s1 + $0x14] sm:$0xf]
        %v288 = vunpack.c.l.b16 %v218
        %v289 = vunpack.c.l.b16 %v219
        %v290 = vunpack.c.l.b16 %v220
        %v291 = vunpack.c.l.b16 %v221
        %v292 = vunpack.c.l.b16 %v222
        %v293 = vunpack.c.l.b16 %v223
        %v294 = vunpack.c.l.b16 %v224
        %v295 = vunpack.c.l.b16 %v225
        %v296 = vunpack.c.l.b16 %v226
        %v297 = vunpack.c.l.b16 %v227
        %v298 = vunpack.c.l.b16 %v228
        %v299 = vunpack.c.l.b16 %v229
        %v300 = vunpack.c.l.b16 %v230
        %v301 = vunpack.c.l.b16 %v231
        %v302 = vunpack.c.l.b16 %v232
        %v303 = vunpack.c.l.b16 %v233
        %v304 = vunpack.c.l.b16 %v234
        %v305 = vunpack.c.l.b16 %v235
        %v306 = vunpack.c.l.b16 %v236
        %v307 = vunpack.c.l.b16 %v237
        %v308 = vunpack.c.l.b16 %v238
        %v309 = vunpack.c.l.b16 %v239
        %v310 = vunpack.c.l.b16 %v240
        %v311 = vunpack.c.l.b16 %v241
        %v312 = vunpack.c.l.b16 %v242
        %v313 = vunpack.c.l.b16 %v243
        %v314 = vunpack.c.l.b16 %v244
        %v315 = vunpack.c.l.b16 %v245
        %v316 = vunpack.c.l.b16 %v246
        %v317 = vunpack.c.l.b16 %v247
        %v318 = vunpack.c.l.b16 %v248
        %v319 = vunpack.c.l.b16 %v249
        %v320 = vpack.c.b16 %v289, %v288
        %v321 = vpack.c.b16 %v291, %v290
        %v322 = vpack.c.b16 %v293, %v292
        %v323 = vpack.c.b16 %v295, %v294
        %v324 = vpack.c.b16 %v297, %v296
        %v325 = vpack.c.b16 %v299, %v298
        %v326 = vpack.c.b16 %v301, %v300
        %v327 = vpack.c.b16 %v303, %v302
        %v328 = vpack.c.b16 %v305, %v304
        %v329 = vpack.c.b16 %v307, %v306
        %v330 = vpack.c.b16 %v309, %v308
        %v331 = vpack.c.b16 %v311, %v310
        %v332 = vpack.c.b16 %v313, %v312
        %v333 = vpack.c.b16 %v315, %v314
        %v334 = vpack.c.b16 %v317, %v316
        %v335 = vpack.c.b16 %v319, %v318
        %v342 = vunpack.c.l.b16 %v250
        %v343 = vunpack.c.l.b16 %v251
        %v344 = vunpack.c.l.b16 %v252
        %v345 = vunpack.c.l.b16 %v253
        %v346 = vunpack.c.l.b16 %v254
        %v347 = vunpack.c.l.b16 %v255
        %v348 = vpack.c.b16 %v343, %v342
        %v349 = vpack.c.b16 %v345, %v344
        %v350 = vpack.c.b16 %v347, %v346
        %vm354 = vcmask 392192
        %v356 = vsel %vm354, %v320, 0
        %v359 = vsel %vm354, %v321, 0
        %v362 = vsel %vm354, %v322, 0
        %v365 = vsel %vm354, %v323, 0
        %v368 = vsel %vm354, %v324, 0
        %v371 = vsel %vm354, %v325, 0
        %v374 = vsel %vm354, %v326, 0
        %v377 = vsel %vm354, %v327, 0
        %v380 = vsel %vm354, %v328, 0
        %v383 = vsel %vm354, %v329, 0
        %v386 = vsel %vm354, %v330, 0
        %v389 = vsel %vm354, %v331, 0
        %v392 = vsel %vm354, %v332, 0
        %v395 = vsel %vm354, %v333, 0
        %v398 = vsel %vm354, %v334, 0
        %v401 = vsel %vm354, %v335, 0
        %403 = vmatprep.subr.bf16.mxu0 0
        %404 = vmatpush1.bf16.msra.mxu0 %v348
        %405 = vmatprep.subr.bf16.mxu0 0
        %406 = vmatpush1.bf16.msra.mxu0 %v349
        %407 = vmatprep.subr.bf16.mxu0 0
        %408 = vmatpush1.bf16.msra.mxu0 %v350
        %409 = vmatprep.subr.bf16.mxu0 0
        %410 = vmatpush1.bf16.msra.mxu0 0
        %411 = vmatprep.subr.bf16.mxu0 0
        %412 = vmatpush1.bf16.msra.mxu0 0
        %413 = vmatprep.subr.bf16.mxu0 0
        %414 = vmatpush1.bf16.msra.mxu0 0
        %415 = vmatprep.subr.bf16.mxu0 0
        %416 = vmatpush1.bf16.msra.mxu0 0
        %417 = vmatprep.subr.bf16.mxu0 0
        %418 = vmatpush1.bf16.msra.mxu0 0
        %419 = vmatprep.subr.bf16.mxu0 0
        %420 = vmatpush1.bf16.msra.mxu0 0
        %421 = vmatprep.subr.bf16.mxu0 0
        %422 = vmatpush1.bf16.msra.mxu0 0
        %423 = vmatprep.subr.bf16.mxu0 0
        %424 = vmatpush1.bf16.msra.mxu0 0
        %425 = vmatprep.subr.bf16.mxu0 0
        %426 = vmatpush1.bf16.msra.mxu0 0
        %427 = vmatprep.subr.bf16.mxu0 0
        %428 = vmatpush1.bf16.msra.mxu0 0
        %429 = vmatprep.subr.bf16.mxu0 0
        %430 = vmatpush1.bf16.msra.mxu0 0
        %431 = vmatprep.subr.bf16.mxu0 0
        %432 = vmatpush1.bf16.msra.mxu0 0
        %433 = vmatprep.subr.bf16.mxu0 0
        %434 = vmatpush1.bf16.msra.mxu0 0
        %435 = vmatprep.mubr.bf16.mxu0 0
        %436 = vmatmul.mubr.bf16.gmra.mrb[0].mxu0 %v356
        %v437 = vpop.f32.mrb[0].mxu0
        %v438 = vadd.f32 0.0, %v437
        %v439 = vpop.f32.mrb[0].mxu0
        %v440 = vpop.f32.mrb[0].mxu0
        %v441 = vadd.f32 0.0, %v440
        %v442 = vpop.f32.mrb[0].mxu0
        %443 = vmatprep.mubr.bf16.mxu0 0
        %444 = vmatmul.mubr.bf16.gmra.mrb[0].mxu0 %v359
        %v445 = vpop.f32.mrb[0].mxu0
        %v446 = vadd.f32 0.0, %v445
        %v447 = vpop.f32.mrb[0].mxu0
        %v448 = vpop.f32.mrb[0].mxu0
        %v449 = vadd.f32 0.0, %v448
        %v450 = vpop.f32.mrb[0].mxu0
        %451 = vmatprep.mubr.bf16.mxu0 0
        %452 = vmatmul.mubr.bf16.gmra.mrb[0].mxu0 %v362
        %v453 = vpop.f32.mrb[0].mxu0
        %v454 = vadd.f32 0.0, %v453
        %v455 = vpop.f32.mrb[0].mxu0
        %v456 = vpop.f32.mrb[0].mxu0
        %v457 = vadd.f32 0.0, %v456
        %v458 = vpop.f32.mrb[0].mxu0
        %459 = vmatprep.mubr.bf16.mxu0 0
        %460 = vmatmul.mubr.bf16.gmra.mrb[0].mxu0 %v365
        %v461 = vpop.f32.mrb[0].mxu0
        %v462 = vadd.f32 0.0, %v461
        %v463 = vpop.f32.mrb[0].mxu0
        %v464 = vpop.f32.mrb[0].mxu0
        %v465 = vadd.f32 0.0, %v464
        %v466 = vpop.f32.mrb[0].mxu0
        %467 = vmatprep.mubr.bf16.mxu0 0
        %468 = vmatmul.mubr.bf16.gmra.mrb[0].mxu0 %v368
        %v469 = vpop.f32.mrb[0].mxu0
        %v470 = vadd.f32 0.0, %v469
        %v471 = vpop.f32.mrb[0].mxu0
        %v472 = vpop.f32.mrb[0].mxu0
        %v473 = vadd.f32 0.0, %v472
        %v474 = vpop.f32.mrb[0].mxu0
        %475 = vmatprep.mubr.bf16.mxu0 0
        %476 = vmatmul.mubr.bf16.gmra.mrb[0].mxu0 %v371
        %v477 = vpop.f32.mrb[0].mxu0
        %v478 = vadd.f32 0.0, %v477
        %v479 = vpop.f32.mrb[0].mxu0
        %v480 = vpop.f32.mrb[0].mxu0
        %v481 = vadd.f32 0.0, %v480
        %v482 = vpop.f32.mrb[0].mxu0
        %483 = vmatprep.mubr.bf16.mxu0 0
        %484 = vmatmul.mubr.bf16.gmra.mrb[0].mxu0 %v374
        %v485 = vpop.f32.mrb[0].mxu0
        %v486 = vadd.f32 0.0, %v485
        %v487 = vpop.f32.mrb[0].mxu0
        %v488 = vpop.f32.mrb[0].mxu0
        %v489 = vadd.f32 0.0, %v488
        %v490 = vpop.f32.mrb[0].mxu0
        %491 = vmatprep.mubr.bf16.mxu0 0
        %492 = vmatmul.mubr.bf16.gmra.mrb[0].mxu0 %v377
        %v493 = vpop.f32.mrb[0].mxu0
        %v494 = vadd.f32 0.0, %v493
        %v495 = vpop.f32.mrb[0].mxu0
        %v496 = vpop.f32.mrb[0].mxu0
        %v497 = vadd.f32 0.0, %v496
        %v498 = vpop.f32.mrb[0].mxu0
        %499 = vmatprep.mubr.bf16.mxu0 0
        %500 = vmatmul.mubr.bf16.gmra.mrb[0].mxu0 %v380
        %v501 = vpop.f32.mrb[0].mxu0
        %v502 = vadd.f32 0.0, %v501
        %v503 = vpop.f32.mrb[0].mxu0
        %v504 = vpop.f32.mrb[0].mxu0
        %v505 = vadd.f32 0.0, %v504
        %v506 = vpop.f32.mrb[0].mxu0
        %507 = vmatprep.mubr.bf16.mxu0 0
        %508 = vmatmul.mubr.bf16.gmra.mrb[0].mxu0 %v383
        %v509 = vpop.f32.mrb[0].mxu0
        %v510 = vadd.f32 0.0, %v509
        %v511 = vpop.f32.mrb[0].mxu0
        %v512 = vpop.f32.mrb[0].mxu0
        %v513 = vadd.f32 0.0, %v512
        %v514 = vpop.f32.mrb[0].mxu0
        %515 = vmatprep.mubr.bf16.mxu0 0
        %516 = vmatmul.mubr.bf16.gmra.mrb[0].mxu0 %v386
        %v517 = vpop.f32.mrb[0].mxu0
        %v518 = vadd.f32 0.0, %v517
        %v519 = vpop.f32.mrb[0].mxu0
        %v520 = vpop.f32.mrb[0].mxu0
        %v521 = vadd.f32 0.0, %v520
        %v522 = vpop.f32.mrb[0].mxu0
        %523 = vmatprep.mubr.bf16.mxu0 0
        %524 = vmatmul.mubr.bf16.gmra.mrb[0].mxu0 %v389
        %v525 = vpop.f32.mrb[0].mxu0
        %v526 = vadd.f32 0.0, %v525
        %v527 = vpop.f32.mrb[0].mxu0
        %v528 = vpop.f32.mrb[0].mxu0
        %v529 = vadd.f32 0.0, %v528
        %v530 = vpop.f32.mrb[0].mxu0
        %531 = vmatprep.mubr.bf16.mxu0 0
        %532 = vmatmul.mubr.bf16.gmra.mrb[0].mxu0 %v392
        %v533 = vpop.f32.mrb[0].mxu0
        %v534 = vadd.f32 0.0, %v533
        %v535 = vpop.f32.mrb[0].mxu0
        %v536 = vpop.f32.mrb[0].mxu0
        %v537 = vadd.f32 0.0, %v536
        %v538 = vpop.f32.mrb[0].mxu0
        %539 = vmatprep.mubr.bf16.mxu0 0
        %540 = vmatmul.mubr.bf16.gmra.mrb[0].mxu0 %v395
        %v541 = vpop.f32.mrb[0].mxu0
        %v542 = vadd.f32 0.0, %v541
        %v543 = vpop.f32.mrb[0].mxu0
        %v544 = vpop.f32.mrb[0].mxu0
        %v545 = vadd.f32 0.0, %v544
        %v546 = vpop.f32.mrb[0].mxu0
        %547 = vmatprep.mubr.bf16.mxu0 0
        %548 = vmatmul.mubr.bf16.gmra.mrb[0].mxu0 %v398
        %v549 = vpop.f32.mrb[0].mxu0
        %v550 = vadd.f32 0.0, %v549
        %v551 = vpop.f32.mrb[0].mxu0
        %v552 = vpop.f32.mrb[0].mxu0
        %v553 = vadd.f32 0.0, %v552
        %v554 = vpop.f32.mrb[0].mxu0
        %555 = vmatprep.mubr.bf16.mxu0 0
        %556 = vmatmul.mubr.bf16.gmra.mrb[0].mxu0 %v401
        %v557 = vpop.f32.mrb[0].mxu0
        %v558 = vadd.f32 0.0, %v557
        %v559 = vpop.f32.mrb[0].mxu0
        %v560 = vpop.f32.mrb[0].mxu0
        %v561 = vadd.f32 0.0, %v560
        %v562 = vpop.f32.mrb[0].mxu0
        %563 = vdwg.mxu0
        %564 = vst [vmem:[%s195] sm:$0xff] %v438
        %565 = vst [vmem:[%s195 + $0x8] sm:$0xff] %v441
        %566 = vst [vmem:[%s195 + $0x10] sm:$0xff] %v446
        %567 = vst [vmem:[%s195 + $0x18] sm:$0xff] %v449
        %568 = vst [vmem:[%s195 + $0x20] sm:$0xff] %v454
        %569 = vst [vmem:[%s195 + $0x28] sm:$0xff] %v457
        %570 = vst [vmem:[%s195 + $0x30] sm:$0xff] %v462
        %571 = vst [vmem:[%s195 + $0x38] sm:$0xff] %v465
        %572 = vst [vmem:[%s195 + $0x40] sm:$0xff] %v470
        %573 = vst [vmem:[%s195 + $0x48] sm:$0xff] %v473
        %574 = vst [vmem:[%s195 + $0x50] sm:$0xff] %v478
        %575 = vst [vmem:[%s195 + $0x58] sm:$0xff] %v481
        %576 = vst [vmem:[%s195 + $0x60] sm:$0xff] %v486
        %577 = vst [vmem:[%s195 + $0x68] sm:$0xff] %v489
        %578 = vst [vmem:[%s195 + $0x70] sm:$0xff] %v494
        %579 = vst [vmem:[%s195 + $0x78] sm:$0xff] %v497
        %580 = vst [vmem:[%s195 + $0x80] sm:$0xff] %v502
        %581 = vst [vmem:[%s195 + $0x88] sm:$0xff] %v505
        %582 = vst [vmem:[%s195 + $0x90] sm:$0xff] %v510
        %583 = vst [vmem:[%s195 + $0x98] sm:$0xff] %v513
        %584 = vst [vmem:[%s195 + $0xa0] sm:$0xff] %v518
        %585 = vst [vmem:[%s195 + $0xa8] sm:$0xff] %v521
        %586 = vst [vmem:[%s195 + $0xb0] sm:$0xff] %v526
        %587 = vst [vmem:[%s195 + $0xb8] sm:$0xff] %v529
        %588 = vst [vmem:[%s195 + $0xc0] sm:$0xff] %v534
        %589 = vst [vmem:[%s195 + $0xc8] sm:$0xff] %v537
        %590 = vst [vmem:[%s195 + $0xd0] sm:$0xff] %v542
        %591 = vst [vmem:[%s195 + $0xd8] sm:$0xff] %v545
        %592 = vst [vmem:[%s195 + $0xe0] sm:$0xff] %v550
        %593 = vst [vmem:[%s195 + $0xe8] sm:$0xff] %v553
        %594 = vst [vmem:[%s195 + $0xf0] sm:$0xff] %v558
        %595 = vst [vmem:[%s195 + $0xf8] sm:$0xff] %v561
        %v596 = vadd.f32 %v438, %v441
        %v597 = vadd.f32 %v596, %v446
        %v598 = vadd.f32 %v597, %v449
        %v599 = vadd.f32 %v598, %v454
        %v600 = vadd.f32 %v599, %v457
        %v601 = vadd.f32 %v600, %v462
        %v602 = vadd.f32 %v601, %v465
        %v603 = vadd.f32 %v602, %v470
        %v604 = vadd.f32 %v603, %v473
        %v605 = vadd.f32 %v604, %v478
        %v606 = vadd.f32 %v605, %v481
        %v607 = vadd.f32 %v606, %v486
        %v608 = vadd.f32 %v607, %v489
        %v609 = vadd.f32 %v608, %v494
        %v610 = vadd.f32 %v609, %v497
        %v611 = vadd.f32 %v610, %v502
        %v612 = vadd.f32 %v611, %v505
        %v613 = vadd.f32 %v612, %v510
        %v614 = vadd.f32 %v613, %v513
        %v615 = vadd.f32 %v614, %v518
        %v616 = vadd.f32 %v615, %v521
        %v617 = vadd.f32 %v616, %v526
        %v618 = vadd.f32 %v617, %v529
        %v619 = vadd.f32 %v618, %v534
        %v620 = vadd.f32 %v619, %v537
        %v621 = vadd.f32 %v620, %v542
        %v622 = vadd.f32 %v621, %v545
        %v623 = vadd.f32 %v622, %v550
        %v624 = vadd.f32 %v623, %v553
        %v625 = vadd.f32 %v624, %v558
        %v626 = vadd.f32 %v625, %v561
        %v627 = vrot.slane %v626, 4
        %v628 = vadd.f32 %v626, %v627
        %v629 = vrot.slane %v628, 2
        %v630 = vadd.f32 %v628, %v629
        %v631 = vrot.slane %v630, 1
        %v632 = vadd.f32 %v630, %v631
        %v633 = vmul.f32 %v438, %v438
        %v634 = vmul.f32 %v441, %v441
        %v635 = vmul.f32 %v446, %v446
        %v636 = vmul.f32 %v449, %v449
        %v637 = vmul.f32 %v454, %v454
        %v638 = vmul.f32 %v457, %v457
        %v639 = vmul.f32 %v462, %v462
        %v640 = vmul.f32 %v465, %v465
        %v641 = vmul.f32 %v470, %v470
        %v642 = vmul.f32 %v473, %v473
        %v643 = vmul.f32 %v478, %v478
        %v644 = vmul.f32 %v481, %v481
        %v645 = vmul.f32 %v486, %v486
        %v646 = vmul.f32 %v489, %v489
        %v647 = vmul.f32 %v494, %v494
        %v648 = vmul.f32 %v497, %v497
        %v649 = vmul.f32 %v502, %v502
        %v650 = vmul.f32 %v505, %v505
        %v651 = vmul.f32 %v510, %v510
        %v652 = vmul.f32 %v513, %v513
        %v653 = vmul.f32 %v518, %v518
        %v654 = vmul.f32 %v521, %v521
        %v655 = vmul.f32 %v526, %v526
        %v656 = vmul.f32 %v529, %v529
        %v657 = vmul.f32 %v534, %v534
        %v658 = vmul.f32 %v537, %v537
        %v659 = vmul.f32 %v542, %v542
        %v660 = vmul.f32 %v545, %v545
        %v661 = vmul.f32 %v550, %v550
        %v662 = vmul.f32 %v553, %v553
        %v663 = vmul.f32 %v558, %v558
        %v664 = vmul.f32 %v561, %v561
        %v665 = vadd.f32 %v633, %v634
        %v666 = vadd.f32 %v665, %v635
        %v667 = vadd.f32 %v666, %v636
        %v668 = vadd.f32 %v667, %v637
        %v669 = vadd.f32 %v668, %v638
        %v670 = vadd.f32 %v669, %v639
        %v671 = vadd.f32 %v670, %v640
        %v672 = vadd.f32 %v671, %v641
        %v673 = vadd.f32 %v672, %v642
        %v674 = vadd.f32 %v673, %v643
        %v675 = vadd.f32 %v674, %v644
        %v676 = vadd.f32 %v675, %v645
        %v677 = vadd.f32 %v676, %v646
        %v678 = vadd.f32 %v677, %v647
        %v679 = vadd.f32 %v678, %v648
        %v680 = vadd.f32 %v679, %v649
        %v681 = vadd.f32 %v680, %v650
        %v682 = vadd.f32 %v681, %v651
        %v683 = vadd.f32 %v682, %v652
        %v684 = vadd.f32 %v683, %v653
        %v685 = vadd.f32 %v684, %v654
        %v686 = vadd.f32 %v685, %v655
        %v687 = vadd.f32 %v686, %v656
        %v688 = vadd.f32 %v687, %v657
        %v689 = vadd.f32 %v688, %v658
        %v690 = vadd.f32 %v689, %v659
        %v691 = vadd.f32 %v690, %v660
        %v692 = vadd.f32 %v691, %v661
        %v693 = vadd.f32 %v692, %v662
        %v694 = vadd.f32 %v693, %v663
        %v695 = vadd.f32 %v694, %v664
        %v696 = vrot.slane %v695, 4
        %v697 = vadd.f32 %v695, %v696
        %v698 = vrot.slane %v697, 2
        %v699 = vadd.f32 %v697, %v698
        %v700 = vrot.slane %v699, 1
        %v701 = vadd.f32 %v699, %v700
        %702 = vst [vmem:[%s202] sm:$0xff] %v632
        %703 = vst [vmem:[%s209] sm:$0xff] %v701
        %s704 = sand.u32 %s77, 1
        %s705 = scalar_lea.sflag [#allocation3], %s704
        %s706 = sand.u32 %s77, 1
        %s707 = smul.addr %s706, 256
        %s708 = scalar_lea.vmem [#allocation2], %s707
        %s709 = sand.u32 %s22, 1
        %s710 = scalar_lea.sflag [#allocation5], %s709
        %s711 = sand.u32 %s103, 1
        %s712 = smul.addr %s711, 8
        %s713 = scalar_lea.vmem [#allocation4], %s712
        %s714 = sand.u32 %s22, 1
        %s715 = scalar_lea.sflag [#allocation5], %s714
        %s716 = sand.u32 %s129, 1
        %s717 = smul.addr %s716, 8
        %s718 = scalar_lea.vmem [#allocation6], %s717
        // Predicated region
        $region29: #{tpu_custom_call.1} parent=27 // pred_check
          %p719 = pneg %p87
        $region30: #{tpu_custom_call.1} parent=27 // pred_check_branch
          %721 = sbr.rel (%p719) target = $region32
        $region31: #{tpu_custom_call.1} parent=27 // pred_region
          %s722 = smul.u32 32, %s22
          %s724 = ssub.s32 4096, 4096
          %725 = vsyncadd %s705, %s724
          %s726 = smul.addr %s722, 128
          %s727 = scalar_lea.hbm %s2, %s726
          %s728 = sshll.u32 %s708, 4
          %s729 = int_to_ptr.vmem [resolvable:$true] %s728
          %734 = dma.vmem_to_hbm [thread:$0]  %s729, 4096, %s727, %s705, 128, 128, 8
        $region32: #{tpu_custom_call.1} parent=27 // pred_fallthru
          _
        // Predicated region
        $region33: #{tpu_custom_call.1} parent=27 // pred_check
          %p735 = pneg %p113
        $region34: #{tpu_custom_call.1} parent=27 // pred_check_branch
          %737 = sbr.rel (%p735) target = $region36
        $region35: #{tpu_custom_call.1} parent=27 // pred_region
          %s739 = ssub.s32 128, 128
          %740 = vsyncadd %s710, %s739
          %s741 = smul.addr %s22, 128
          %s742 = scalar_lea.hbm %s3, %s741
          %s744 = sshll.u32 %s713, 4
          %s745 = int_to_ptr.vmem [resolvable:$true] %s744
          %747 = dma.vmem_to_hbm [thread:$0]  %s745, 128, %s742, %s710
        $region36: #{tpu_custom_call.1} parent=27 // pred_fallthru
          _
        // Predicated region
        $region37: #{tpu_custom_call.1} parent=27 // pred_check
          %p748 = pneg %p139
        $region38: #{tpu_custom_call.1} parent=27 // pred_check_branch
          %750 = sbr.rel (%p748) target = $region40
        $region39: #{tpu_custom_call.1} parent=27 // pred_region
          %s752 = ssub.s32 128, 128
          %753 = vsyncadd %s715, %s752
          %s754 = smul.addr %s22, 128
          %s755 = scalar_lea.hbm %s4, %s754
          %s757 = sshll.u32 %s718, 4
          %s758 = int_to_ptr.vmem [resolvable:$true] %s757
          %760 = dma.vmem_to_hbm [thread:$0]  %s758, 128, %s755, %s715
        $region40: #{tpu_custom_call.1} parent=27 // pred_fallthru
          _
      $region28: #{tpu_custom_call.1} parent=5 // pred_fallthru
        _
      %p761 = scmp.le.s32.totalorder 2, %s17
      // Predicated region
      $region41: #{tpu_custom_call.1} parent=5 // pred_check
        %p762 = pneg %p761
      $region42: #{tpu_custom_call.1} parent=5 // pred_check_branch
        %764 = sbr.rel (%p762) target = $region44
      $region43: #{tpu_custom_call.1} parent=5 // pred_region
        %s765 = ssub.s32 %s17, 2
        // Predicated region
        $region45: #{tpu_custom_call.1} parent=43 // pred_check
          %p766 = pneg %p93
        $region46: #{tpu_custom_call.1} parent=43 // pred_check_branch
          %768 = sbr.rel (%p766) target = $region48
        $region47: #{tpu_custom_call.1} parent=43 // pred_region
          %s769 = sand.u32 %s78, 1
          %s770 = scalar_lea.sflag [#allocation3], %s769
          %s771 = sand.u32 %s78, 1
          %s772 = smul.addr %s771, 256
          %s773 = scalar_lea.vmem [#allocation2], %s772
          %774 = dma.done %s770, 4096
        $region48: #{tpu_custom_call.1} parent=43 // pred_fallthru
          _
        // Predicated region
        $region49: #{tpu_custom_call.1} parent=43 // pred_check
          %p775 = pneg %p119
        $region50: #{tpu_custom_call.1} parent=43 // pred_check_branch
          %777 = sbr.rel (%p775) target = $region52
        $region51: #{tpu_custom_call.1} parent=43 // pred_region
          %s778 = sand.u32 %s23, 1
          %s779 = scalar_lea.sflag [#allocation5], %s778
          %s780 = sand.u32 %s104, 1
          %s781 = smul.addr %s780, 8
          %s782 = scalar_lea.vmem [#allocation4], %s781
          %783 = dma.done %s779, 128
        $region52: #{tpu_custom_call.1} parent=43 // pred_fallthru
          _
        // Predicated region
        $region53: #{tpu_custom_call.1} parent=43 // pred_check
          %p784 = pneg %p145
        $region54: #{tpu_custom_call.1} parent=43 // pred_check_branch
          %786 = sbr.rel (%p784) target = $region56
        $region55: #{tpu_custom_call.1} parent=43 // pred_region
          %s787 = sand.u32 %s23, 1
          %s788 = scalar_lea.sflag [#allocation5], %s787
          %s789 = sand.u32 %s130, 1
          %s790 = smul.addr %s789, 8
          %s791 = scalar_lea.vmem [#allocation6], %s790
          %792 = dma.done %s788, 128
        $region56: #{tpu_custom_call.1} parent=43 // pred_fallthru
          _
      $region44: #{tpu_custom_call.1} parent=5 // pred_fallthru
        _
    $region6: #{tpu_custom_call.1} parent=1 // loop_footer
      %s21 = sadd.s32 1, %s17
    $region7: #{tpu_custom_call.1} parent=1 // loop_footer_branch
      %16 = sbr.rel target = $region3
    $region8: #{tpu_custom_call.1} parent=1 // loop_exit
      _
    %793 = vsyncpa [#allocation3], 1
    %s794 = scalar_lea.sflag [#allocation3], 1
    %795 = vsyncpa %s794, 1
    %796 = vsyncpa [#allocation5], 1
    %s797 = scalar_lea.sflag [#allocation5], 1
    %798 = vsyncpa %s797, 1

</llo_original>
